<compile_context>
chip_gen: v5e
topology: v5e:2x2
jax: 0.10.0
libtpu: 0.0.40
codegen_flags: <defaults>
</compile_context>

<pallas_src>
import functools

import jax
import jax.numpy as jnp
from jax.experimental import pallas as pl
from jax.experimental.pallas import tpu as pltpu

_LANE = 128


def _round_up(x, m):
    return (x + m - 1) // m * m


def _preferred_tile_m():
    """256 rows fill the 2x256x256 MXU on v6e/v7x; v5e's MXU is 128x128."""
    try:
        kind = jax.devices()[0].device_kind.lower()
        if "v5" in kind:
            return 128
    except Exception:  # defensive: 256 is correct (just not optimal) everywhere
        pass
    return 256


def _mlp_kernel(x_ref, *refs, num_layers):
    """Fused MLP body: y = (((x @ W0 + b0) @ W1 + b1) ...).

    The activation is carried in vregs between layers (no VMEM round trips).
    Matmul operands are bf16 (MXU-native); accumulation and the bias add stay
    in f32 to minimize drift vs. the f32 reference."""
    o_ref = refs[2 * num_layers]
    h = x_ref[...].astype(jnp.float32)
    for l in range(num_layers):          # static unroll: num_layers is compile-time
        w_ref = refs[2 * l]              # (K_l_pad, N_l_pad) bf16, pre-transposed
        b_ref = refs[2 * l + 1]          # (1, N_l_pad) f32
        h = jnp.dot(h.astype(w_ref.dtype), w_ref[...],
                    preferred_element_type=jnp.float32) + b_ref[...]
    o_ref[...] = h.astype(o_ref.dtype)


def _const_block_spec(shape, single_buffer):
    """BlockSpec for a grid-invariant (weight/bias) input.

    The index_map is constant across the grid, so double-buffering would be
    pure VMEM waste -> request a single buffer when supported."""
    ndim = len(shape)
    index_map = lambda i: (0,) * ndim
    if single_buffer:
        return pl.BlockSpec(shape, index_map, pipeline_mode=pl.Buffered(1))
    return pl.BlockSpec(shape, index_map)


@functools.partial(jax.jit, static_argnames=("out_feats", "single_buffer_weights"))
def _mlp_forward_impl(x, weights, biases, *, out_feats, single_buffer_weights):
    num_layers = len(weights)
    M, K = x.shape
    K0p = weights[0].shape[0]        # padded input width of layer 0
    NLp = weights[-1].shape[1]       # padded output width of last layer

    # Zero-fill only the feature padding (no-op when in_feats is already a
    # 128-multiple).  Batch remainder is handled by the grid: the last block
    # may read garbage rows, but each output row depends only on its own input
    # row and out-of-bounds rows are discarded on the store.
    if K != K0p:
        x = jnp.pad(x, ((0, 0), (0, K0p - K)))

    # Batch tiling: one step for small batches, >=2 steps for mid-size batches
    # (so "parallel" actually shards across both v7x TCs), fixed MXU-shaped
    # tiles beyond that.
    pref = _preferred_tile_m()
    if M <= pref:
        tm = M                                   # block dim == full batch dim
    elif M <= 2 * pref:
        tm = _round_up(pl.cdiv(M, 2), 8)         # exactly 2 grid steps
    else:
        tm = pref
    grid_m = pl.cdiv(M, tm)

    in_specs = [pl.BlockSpec((tm, K0p), lambda i: (i, 0))]
    flat_wb = []
    for w, b in zip(weights, biases):
        in_specs.append(_const_block_spec(w.shape, single_buffer_weights))
        in_specs.append(_const_block_spec(b.shape, single_buffer_weights))
        flat_wb += [w, b]

    # Explicit VMEM budget: weights/biases (x1 or x2 buffers) + double-buffered
    # activation tiles + headroom for register-carried intermediates / spills.
    wbufs = 1 if single_buffer_weights else 2
    weight_bytes = (sum(w.size * w.dtype.itemsize for w in weights)
                    + sum(b.size * b.dtype.itemsize for b in biases))
    max_np = max(w.shape[1] for w in weights)
    act_bytes = 2 * tm * K0p * x.dtype.itemsize + 2 * tm * NLp * x.dtype.itemsize
    inter_bytes = 2 * tm * max_np * 4
    vmem_limit = min(2 * (wbufs * weight_bytes + act_bytes + inter_bytes) + (8 << 20),
                     64 << 20)

    flops = 2 * grid_m * tm * sum(w.shape[0] * w.shape[1] for w in weights)
    bytes_accessed = (x.size * x.dtype.itemsize
                      + weight_bytes
                      + M * NLp * x.dtype.itemsize)
    cost = pl.CostEstimate(flops=flops, transcendentals=0,
                           bytes_accessed=bytes_accessed)

    out_pad = pl.pallas_call(
        functools.partial(_mlp_kernel, num_layers=num_layers),
        out_shape=jax.ShapeDtypeStruct((M, NLp), x.dtype),
        grid_spec=pltpu.PrefetchScalarGridSpec(
            num_scalar_prefetch=0,
            grid=(grid_m,),
            in_specs=in_specs,
            out_specs=pl.BlockSpec((tm, NLp), lambda i: (i, 0)),
        ),
        compiler_params=pltpu.CompilerParams(
            dimension_semantics=("parallel",),
            vmem_limit_bytes=int(vmem_limit),
        ),
        cost_estimate=cost,
    )(x, *flat_wb)

    # Lane-dense (128-multiple) padded store inside the kernel; slice the valid
    # output features here.
    return out_pad[:, :out_feats]


def mlp_forward_pallas(x, weights, biases, *, out_feats):
    """Forward pass.  Tries the single-buffered-weights variant first and falls
    back to default (double) buffering if this Pallas version rejects
    pl.Buffered(1), so the script always runs cleanly."""
    weights, biases = tuple(weights), tuple(biases)
    try:
        return _mlp_forward_impl(x, weights, biases, out_feats=out_feats,
                                 single_buffer_weights=True)
    except Exception:
        return _mlp_forward_impl(x, weights, biases, out_feats=out_feats,
                                 single_buffer_weights=False)


def init_mlp_params(key, in_feats, hidden_feats, out_feats, layers):
    """Deterministic params mirroring the PyTorch MLP.__init__ layer structure
    exactly (layers==1 -> one Linear; otherwise first + (layers-1) hidden +
    last, i.e. layers+1 nn.Linear modules, same as the reference code).
    Returns a list of (w [out,in], b [out]) in PyTorch nn.Linear layout."""
    dims = []
    if layers == 1:
        dims.append((in_feats, out_feats))
    else:
        dims.append((in_feats, hidden_feats))
        for _ in range(layers - 1):
            dims.append((hidden_feats, hidden_feats))
        dims.append((hidden_feats, out_feats))

    params = []
    for fan_in, fan_out in dims:
        key, kw, kb = jax.random.split(key, 3)
        bound = 1.0 / (fan_in ** 0.5)      # PyTorch nn.Linear default init range
        w = jax.random.uniform(kw, (fan_out, fan_in), jnp.float32, -bound, bound)
        b = jax.random.uniform(kb, (fan_out,), jnp.float32, -bound, bound)
        params.append((w, b))
    return params


def prepare_mlp_params(params, lane=_LANE):
    """ONE-TIME layout prep (outside the forward path):
      * transpose each PyTorch (out,in) weight to (in,out),
      * zero-pad each layer's (K_l, N_l) independently to 128-multiples
        (no square W_max x W_max padding),
      * store weights in bf16 (MXU-native operands), biases as f32 (1, N_pad)
        rows so the in-kernel bias add is an f32 broadcast.
    Consecutive layers share dims (N_{l-1} == K_l) so the padded shapes chain
    consistently and the zero padding contributes exact zeros downstream."""
    weights, biases = [], []
    for w, b in params:
        n, k = w.shape                        # PyTorch layout: (out, in)
        kp, npad = _round_up(k, lane), _round_up(n, lane)
        wp = jnp.zeros((kp, npad), jnp.bfloat16).at[:k, :n].set(
            w.T.astype(jnp.bfloat16))
        bp = jnp.zeros((1, npad), jnp.float32).at[0, :n].set(b)
        weights.append(wp)
        biases.append(bp)
    return weights, biases


def mlp_forward_ref(x, params):
    # Pure-JAX f32 reference in PyTorch layout, for correctness checking.
    for (w, b) in params:
        x = x @ w.T + b
    return x


if __name__ == "__main__":
    key = jax.random.PRNGKey(0)

    batch = 8
    in_feats, hidden_feats, out_feats, layers = 16, 32, 8, 3

    k_x, k_p = jax.random.split(key)
    x = jax.random.normal(k_x, (batch, in_feats), jnp.float32)

    params = init_mlp_params(k_p, in_feats, hidden_feats, out_feats, layers)
    weights, biases = prepare_mlp_params(params)   # one-time transpose/pad/bf16

    out = mlp_forward_pallas(x, weights, biases, out_feats=out_feats)
    out = jax.block_until_ready(out)

    ref = mlp_forward_ref(x, params)
    assert out.shape == (batch, out_feats), out.shape
    # bf16 matmul operands with f32 accumulation -> looser tolerance vs f32 ref.
    assert jnp.allclose(out, ref, atol=5e-2, rtol=5e-2), "mismatch vs JAX reference"

    print("KERNEL_OK")
</pallas_src>

<mosaic_0001>
module attributes {stable_mosaic.version = 11 : i64} {
  func.func @_mlp_kernel(%arg0: i32, %arg1: memref<8x128xf32, #tpu.memory_space<vmem>>, %arg2: memref<128x128xbf16, #tpu.memory_space<vmem>>, %arg3: memref<1x128xf32, #tpu.memory_space<vmem>>, %arg4: memref<128x128xbf16, #tpu.memory_space<vmem>>, %arg5: memref<1x128xf32, #tpu.memory_space<vmem>>, %arg6: memref<128x128xbf16, #tpu.memory_space<vmem>>, %arg7: memref<1x128xf32, #tpu.memory_space<vmem>>, %arg8: memref<128x128xbf16, #tpu.memory_space<vmem>>, %arg9: memref<1x128xf32, #tpu.memory_space<vmem>>, %arg10: memref<8x128xf32, #tpu.memory_space<vmem>>) attributes {dimension_semantics = [#tpu.dimension_semantics<parallel>], iteration_bounds = array<i64: 1>, scalar_prefetch = 0 : i64, scratch_operands = 0 : i64, tpu.core_type = #tpu.core_type<tc>, window_params = [{transform_indices = @transform_0, window_bounds = array<i64: 8, 128>}, {pipeline_mode = #tpu.pipeline_mode<synchronous>, transform_indices = @transform_1, window_bounds = array<i64: 128, 128>}, {pipeline_mode = #tpu.pipeline_mode<synchronous>, transform_indices = @transform_2, window_bounds = array<i64: 1, 128>}, {pipeline_mode = #tpu.pipeline_mode<synchronous>, transform_indices = @transform_3, window_bounds = array<i64: 128, 128>}, {pipeline_mode = #tpu.pipeline_mode<synchronous>, transform_indices = @transform_4, window_bounds = array<i64: 1, 128>}, {pipeline_mode = #tpu.pipeline_mode<synchronous>, transform_indices = @transform_5, window_bounds = array<i64: 128, 128>}, {pipeline_mode = #tpu.pipeline_mode<synchronous>, transform_indices = @transform_6, window_bounds = array<i64: 1, 128>}, {pipeline_mode = #tpu.pipeline_mode<synchronous>, transform_indices = @transform_7, window_bounds = array<i64: 128, 128>}, {pipeline_mode = #tpu.pipeline_mode<synchronous>, transform_indices = @transform_8, window_bounds = array<i64: 1, 128>}, {transform_indices = @transform_9, window_bounds = array<i64: 8, 128>}]} {
    %c0 = arith.constant 0 : index
    %c0_0 = arith.constant 0 : index
    %0 = vector.load %arg1[%c0, %c0_0] : memref<8x128xf32, #tpu.memory_space<vmem>>, vector<8x128xf32>
    %1 = arith.truncf %0 : vector<8x128xf32> to vector<8x128xbf16>
    %c0_1 = arith.constant 0 : index
    %c0_2 = arith.constant 0 : index
    %2 = vector.load %arg2[%c0_1, %c0_2] : memref<128x128xbf16, #tpu.memory_space<vmem>>, vector<128x128xbf16>
    %cst = arith.constant dense<0.000000e+00> : vector<8x128xf32>
    %3 = tpu.matmul %1, %2, %cst {dimension_numbers = #tpu.dot_dimension_numbers<[1], [0], [0], [1], [0, 0, 1, 1], [], []>} : vector<8x128xbf16>, vector<128x128xbf16>, vector<8x128xf32> -> vector<8x128xf32>
    %c0_3 = arith.constant 0 : index
    %c0_4 = arith.constant 0 : index
    %4 = vector.load %arg3[%c0_3, %c0_4] : memref<1x128xf32, #tpu.memory_space<vmem>>, vector<1x128xf32>
    %5 = vector.broadcast %4 : vector<1x128xf32> to vector<8x128xf32>
    %6 = arith.addf %3, %5 : vector<8x128xf32>
    %7 = arith.truncf %6 : vector<8x128xf32> to vector<8x128xbf16>
    %c0_5 = arith.constant 0 : index
    %c0_6 = arith.constant 0 : index
    %8 = vector.load %arg4[%c0_5, %c0_6] : memref<128x128xbf16, #tpu.memory_space<vmem>>, vector<128x128xbf16>
    %cst_7 = arith.constant dense<0.000000e+00> : vector<8x128xf32>
    %9 = tpu.matmul %7, %8, %cst_7 {dimension_numbers = #tpu.dot_dimension_numbers<[1], [0], [0], [1], [0, 0, 1, 1], [], []>} : vector<8x128xbf16>, vector<128x128xbf16>, vector<8x128xf32> -> vector<8x128xf32>
    %c0_8 = arith.constant 0 : index
    %c0_9 = arith.constant 0 : index
    %10 = vector.load %arg5[%c0_8, %c0_9] : memref<1x128xf32, #tpu.memory_space<vmem>>, vector<1x128xf32>
    %11 = vector.broadcast %10 : vector<1x128xf32> to vector<8x128xf32>
    %12 = arith.addf %9, %11 : vector<8x128xf32>
    %13 = arith.truncf %12 : vector<8x128xf32> to vector<8x128xbf16>
    %c0_10 = arith.constant 0 : index
    %c0_11 = arith.constant 0 : index
    %14 = vector.load %arg6[%c0_10, %c0_11] : memref<128x128xbf16, #tpu.memory_space<vmem>>, vector<128x128xbf16>
    %cst_12 = arith.constant dense<0.000000e+00> : vector<8x128xf32>
    %15 = tpu.matmul %13, %14, %cst_12 {dimension_numbers = #tpu.dot_dimension_numbers<[1], [0], [0], [1], [0, 0, 1, 1], [], []>} : vector<8x128xbf16>, vector<128x128xbf16>, vector<8x128xf32> -> vector<8x128xf32>
    %c0_13 = arith.constant 0 : index
    %c0_14 = arith.constant 0 : index
    %16 = vector.load %arg7[%c0_13, %c0_14] : memref<1x128xf32, #tpu.memory_space<vmem>>, vector<1x128xf32>
    %17 = vector.broadcast %16 : vector<1x128xf32> to vector<8x128xf32>
    %18 = arith.addf %15, %17 : vector<8x128xf32>
    %19 = arith.truncf %18 : vector<8x128xf32> to vector<8x128xbf16>
    %c0_15 = arith.constant 0 : index
    %c0_16 = arith.constant 0 : index
    %20 = vector.load %arg8[%c0_15, %c0_16] : memref<128x128xbf16, #tpu.memory_space<vmem>>, vector<128x128xbf16>
    %cst_17 = arith.constant dense<0.000000e+00> : vector<8x128xf32>
    %21 = tpu.matmul %19, %20, %cst_17 {dimension_numbers = #tpu.dot_dimension_numbers<[1], [0], [0], [1], [0, 0, 1, 1], [], []>} : vector<8x128xbf16>, vector<128x128xbf16>, vector<8x128xf32> -> vector<8x128xf32>
    %c0_18 = arith.constant 0 : index
    %c0_19 = arith.constant 0 : index
    %22 = vector.load %arg9[%c0_18, %c0_19] : memref<1x128xf32, #tpu.memory_space<vmem>>, vector<1x128xf32>
    %23 = vector.broadcast %22 : vector<1x128xf32> to vector<8x128xf32>
    %24 = arith.addf %21, %23 : vector<8x128xf32>
    %c0_20 = arith.constant 0 : index
    %c0_21 = arith.constant 0 : index
    %25 = vector.load %arg10[%c0_20, %c0_21] : memref<8x128xf32, #tpu.memory_space<vmem>>, vector<8x128xf32>
    tpu.vector_store %arg10[%c0_20, %c0_21], %24 {strides = array<i32>} : memref<8x128xf32, #tpu.memory_space<vmem>>, vector<8x128xf32>,
    return
  }
  func.func @transform_0(%arg0: i32) -> (i32, i32) {
    %c0_i32 = arith.constant 0 : i32
    %c0_i32_0 = arith.constant 0 : i32
    return %arg0, %c0_i32 : i32, i32
  }
  func.func @transform_1(%arg0: i32) -> (i32, i32) {
    %c0_i32 = arith.constant 0 : i32
    %c0_i32_0 = arith.constant 0 : i32
    %c0_i32_1 = arith.constant 0 : i32
    return %c0_i32, %c0_i32_0 : i32, i32
  }
  func.func @transform_2(%arg0: i32) -> (i32, i32) {
    %c0_i32 = arith.constant 0 : i32
    %c0_i32_0 = arith.constant 0 : i32
    %c0_i32_1 = arith.constant 0 : i32
    return %c0_i32, %c0_i32_0 : i32, i32
  }
  func.func @transform_3(%arg0: i32) -> (i32, i32) {
    %c0_i32 = arith.constant 0 : i32
    %c0_i32_0 = arith.constant 0 : i32
    %c0_i32_1 = arith.constant 0 : i32
    return %c0_i32, %c0_i32_0 : i32, i32
  }
  func.func @transform_4(%arg0: i32) -> (i32, i32) {
    %c0_i32 = arith.constant 0 : i32
    %c0_i32_0 = arith.constant 0 : i32
    %c0_i32_1 = arith.constant 0 : i32
    return %c0_i32, %c0_i32_0 : i32, i32
  }
  func.func @transform_5(%arg0: i32) -> (i32, i32) {
    %c0_i32 = arith.constant 0 : i32
    %c0_i32_0 = arith.constant 0 : i32
    %c0_i32_1 = arith.constant 0 : i32
    return %c0_i32, %c0_i32_0 : i32, i32
  }
  func.func @transform_6(%arg0: i32) -> (i32, i32) {
    %c0_i32 = arith.constant 0 : i32
    %c0_i32_0 = arith.constant 0 : i32
    %c0_i32_1 = arith.constant 0 : i32
    return %c0_i32, %c0_i32_0 : i32, i32
  }
  func.func @transform_7(%arg0: i32) -> (i32, i32) {
    %c0_i32 = arith.constant 0 : i32
    %c0_i32_0 = arith.constant 0 : i32
    %c0_i32_1 = arith.constant 0 : i32
    return %c0_i32, %c0_i32_0 : i32, i32
  }
  func.func @transform_8(%arg0: i32) -> (i32, i32) {
    %c0_i32 = arith.constant 0 : i32
    %c0_i32_0 = arith.constant 0 : i32
    %c0_i32_1 = arith.constant 0 : i32
    return %c0_i32, %c0_i32_0 : i32, i32
  }
  func.func @transform_9(%arg0: i32) -> (i32, i32) {
    %c0_i32 = arith.constant 0 : i32
    %c0_i32_0 = arith.constant 0 : i32
    return %arg0, %c0_i32 : i32, i32
  }
}

module attributes {stable_mosaic.version = 11 : i64} {
  func.func @_mlp_kernel(%arg0: i32, %arg1: memref<8x128xf32, #tpu.memory_space<vmem>>, %arg2: memref<128x128xbf16, #tpu.memory_space<vmem>>, %arg3: memref<1x128xf32, #tpu.memory_space<vmem>>, %arg4: memref<128x128xbf16, #tpu.memory_space<vmem>>, %arg5: memref<1x128xf32, #tpu.memory_space<vmem>>, %arg6: memref<128x128xbf16, #tpu.memory_space<vmem>>, %arg7: memref<1x128xf32, #tpu.memory_space<vmem>>, %arg8: memref<128x128xbf16, #tpu.memory_space<vmem>>, %arg9: memref<1x128xf32, #tpu.memory_space<vmem>>, %arg10: memref<8x128xf32, #tpu.memory_space<vmem>>) attributes {dimension_semantics = [#tpu.dimension_semantics<parallel>], iteration_bounds = array<i64: 1>, scalar_prefetch = 0 : i64, scratch_operands = 0 : i64, tpu.core_type = #tpu.core_type<tc>, window_params = [{transform_indices = @transform_0, window_bounds = array<i64: 8, 128>}, {pipeline_mode = #tpu.pipeline_mode<synchronous>, transform_indices = @transform_1, window_bounds = array<i64: 128, 128>}, {pipeline_mode = #tpu.pipeline_mode<synchronous>, transform_indices = @transform_2, window_bounds = array<i64: 1, 128>}, {pipeline_mode = #tpu.pipeline_mode<synchronous>, transform_indices = @transform_3, window_bounds = array<i64: 128, 128>}, {pipeline_mode = #tpu.pipeline_mode<synchronous>, transform_indices = @transform_4, window_bounds = array<i64: 1, 128>}, {pipeline_mode = #tpu.pipeline_mode<synchronous>, transform_indices = @transform_5, window_bounds = array<i64: 128, 128>}, {pipeline_mode = #tpu.pipeline_mode<synchronous>, transform_indices = @transform_6, window_bounds = array<i64: 1, 128>}, {pipeline_mode = #tpu.pipeline_mode<synchronous>, transform_indices = @transform_7, window_bounds = array<i64: 128, 128>}, {pipeline_mode = #tpu.pipeline_mode<synchronous>, transform_indices = @transform_8, window_bounds = array<i64: 1, 128>}, {transform_indices = @transform_9, window_bounds = array<i64: 8, 128>}]} {
    %c0 = arith.constant 0 : index
    %c0_0 = arith.constant 0 : index
    %0 = vector.load %arg1[%c0, %c0_0] : memref<8x128xf32, #tpu.memory_space<vmem>>, vector<8x128xf32>
    %1 = arith.truncf %0 : vector<8x128xf32> to vector<8x128xbf16>
    %c0_1 = arith.constant 0 : index
    %c0_2 = arith.constant 0 : index
    %2 = vector.load %arg2[%c0_1, %c0_2] : memref<128x128xbf16, #tpu.memory_space<vmem>>, vector<128x128xbf16>
    %cst = arith.constant dense<0.000000e+00> : vector<8x128xf32>
    %3 = tpu.matmul %1, %2, %cst {dimension_numbers = #tpu.dot_dimension_numbers<[1], [0], [0], [1], [0, 0, 1, 1], [], []>} : vector<8x128xbf16>, vector<128x128xbf16>, vector<8x128xf32> -> vector<8x128xf32>
    %c0_3 = arith.constant 0 : index
    %c0_4 = arith.constant 0 : index
    %4 = vector.load %arg3[%c0_3, %c0_4] : memref<1x128xf32, #tpu.memory_space<vmem>>, vector<1x128xf32>
    %5 = vector.broadcast %4 : vector<1x128xf32> to vector<8x128xf32>
    %6 = arith.addf %3, %5 : vector<8x128xf32>
    %7 = arith.truncf %6 : vector<8x128xf32> to vector<8x128xbf16>
    %c0_5 = arith.constant 0 : index
    %c0_6 = arith.constant 0 : index
    %8 = vector.load %arg4[%c0_5, %c0_6] : memref<128x128xbf16, #tpu.memory_space<vmem>>, vector<128x128xbf16>
    %cst_7 = arith.constant dense<0.000000e+00> : vector<8x128xf32>
    %9 = tpu.matmul %7, %8, %cst_7 {dimension_numbers = #tpu.dot_dimension_numbers<[1], [0], [0], [1], [0, 0, 1, 1], [], []>} : vector<8x128xbf16>, vector<128x128xbf16>, vector<8x128xf32> -> vector<8x128xf32>
    %c0_8 = arith.constant 0 : index
    %c0_9 = arith.constant 0 : index
    %10 = vector.load %arg5[%c0_8, %c0_9] : memref<1x128xf32, #tpu.memory_space<vmem>>, vector<1x128xf32>
    %11 = vector.broadcast %10 : vector<1x128xf32> to vector<8x128xf32>
    %12 = arith.addf %9, %11 : vector<8x128xf32>
    %13 = arith.truncf %12 : vector<8x128xf32> to vector<8x128xbf16>
    %c0_10 = arith.constant 0 : index
    %c0_11 = arith.constant 0 : index
    %14 = vector.load %arg6[%c0_10, %c0_11] : memref<128x128xbf16, #tpu.memory_space<vmem>>, vector<128x128xbf16>
    %cst_12 = arith.constant dense<0.000000e+00> : vector<8x128xf32>
    %15 = tpu.matmul %13, %14, %cst_12 {dimension_numbers = #tpu.dot_dimension_numbers<[1], [0], [0], [1], [0, 0, 1, 1], [], []>} : vector<8x128xbf16>, vector<128x128xbf16>, vector<8x128xf32> -> vector<8x128xf32>
    %c0_13 = arith.constant 0 : index
    %c0_14 = arith.constant 0 : index
    %16 = vector.load %arg7[%c0_13, %c0_14] : memref<1x128xf32, #tpu.memory_space<vmem>>, vector<1x128xf32>
    %17 = vector.broadcast %16 : vector<1x128xf32> to vector<8x128xf32>
    %18 = arith.addf %15, %17 : vector<8x128xf32>
    %19 = arith.truncf %18 : vector<8x128xf32> to vector<8x128xbf16>
    %c0_15 = arith.constant 0 : index
    %c0_16 = arith.constant 0 : index
    %20 = vector.load %arg8[%c0_15, %c0_16] : memref<128x128xbf16, #tpu.memory_space<vmem>>, vector<128x128xbf16>
    %cst_17 = arith.constant dense<0.000000e+00> : vector<8x128xf32>
    %21 = tpu.matmul %19, %20, %cst_17 {dimension_numbers = #tpu.dot_dimension_numbers<[1], [0], [0], [1], [0, 0, 1, 1], [], []>} : vector<8x128xbf16>, vector<128x128xbf16>, vector<8x128xf32> -> vector<8x128xf32>
    %c0_18 = arith.constant 0 : index
    %c0_19 = arith.constant 0 : index
    %22 = vector.load %arg9[%c0_18, %c0_19] : memref<1x128xf32, #tpu.memory_space<vmem>>, vector<1x128xf32>
    %23 = vector.broadcast %22 : vector<1x128xf32> to vector<8x128xf32>
    %24 = arith.addf %21, %23 : vector<8x128xf32>
    %c0_20 = arith.constant 0 : index
    %c0_21 = arith.constant 0 : index
    %25 = vector.load %arg10[%c0_20, %c0_21] : memref<8x128xf32, #tpu.memory_space<vmem>>, vector<8x128xf32>
    tpu.vector_store %arg10[%c0_20, %c0_21], %24 {strides = array<i32>} : memref<8x128xf32, #tpu.memory_space<vmem>>, vector<8x128xf32>,
    return
  }
  func.func @transform_0(%arg0: i32) -> (i32, i32) {
    %c0_i32 = arith.constant 0 : i32
    %c0_i32_0 = arith.constant 0 : i32
    return %arg0, %c0_i32 : i32, i32
  }
  func.func @transform_1(%arg0: i32) -> (i32, i32) {
    %c0_i32 = arith.constant 0 : i32
    %c0_i32_0 = arith.constant 0 : i32
    %c0_i32_1 = arith.constant 0 : i32
    return %c0_i32, %c0_i32_0 : i32, i32
  }
  func.func @transform_2(%arg0: i32) -> (i32, i32) {
    %c0_i32 = arith.constant 0 : i32
    %c0_i32_0 = arith.constant 0 : i32
    %c0_i32_1 = arith.constant 0 : i32
    return %c0_i32, %c0_i32_0 : i32, i32
  }
  func.func @transform_3(%arg0: i32) -> (i32, i32) {
    %c0_i32 = arith.constant 0 : i32
    %c0_i32_0 = arith.constant 0 : i32
    %c0_i32_1 = arith.constant 0 : i32
    return %c0_i32, %c0_i32_0 : i32, i32
  }
  func.func @transform_4(%arg0: i32) -> (i32, i32) {
    %c0_i32 = arith.constant 0 : i32
    %c0_i32_0 = arith.constant 0 : i32
    %c0_i32_1 = arith.constant 0 : i32
    return %c0_i32, %c0_i32_0 : i32, i32
  }
  func.func @transform_5(%arg0: i32) -> (i32, i32) {
    %c0_i32 = arith.constant 0 : i32
    %c0_i32_0 = arith.constant 0 : i32
    %c0_i32_1 = arith.constant 0 : i32
    return %c0_i32, %c0_i32_0 : i32, i32
  }
  func.func @transform_6(%arg0: i32) -> (i32, i32) {
    %c0_i32 = arith.constant 0 : i32
    %c0_i32_0 = arith.constant 0 : i32
    %c0_i32_1 = arith.constant 0 : i32
    return %c0_i32, %c0_i32_0 : i32, i32
  }
  func.func @transform_7(%arg0: i32) -> (i32, i32) {
    %c0_i32 = arith.constant 0 : i32
    %c0_i32_0 = arith.constant 0 : i32
    %c0_i32_1 = arith.constant 0 : i32
    return %c0_i32, %c0_i32_0 : i32, i32
  }
  func.func @transform_8(%arg0: i32) -> (i32, i32) {
    %c0_i32 = arith.constant 0 : i32
    %c0_i32_0 = arith.constant 0 : i32
    %c0_i32_1 = arith.constant 0 : i32
    return %c0_i32, %c0_i32_0 : i32, i32
  }
  func.func @transform_9(%arg0: i32) -> (i32, i32) {
    %c0_i32 = arith.constant 0 : i32
    %c0_i32_0 = arith.constant 0 : i32
    return %arg0, %c0_i32 : i32, i32
  }
}

</mosaic_0001>

<llo_original>
// kernel: _mlp_forward_impl.1
$region0: #{_mlp_forward_impl.1}
  #allocation0 [shape = 'u32[]', space=smem, size = 0x4, offset = 0x4, fixed_abs, tag = 'smem constant byte address 0x4 - core index']
  #allocation1 [shape = 'u32[72,128]{1,0:T(1,128)}', space=vmem, size = 0x9000, scoped, tag = 'internal scratch']
  %s0 = inlined_call_operand.vmem [shape: f32[8,128], index: 0, kind: input, shape index: {}]
  %s1 = inlined_call_operand.hbm [shape: bf16[128,128], index: 1, kind: input, shape index: {}]
  %s2 = inlined_call_operand.vmem [shape: f32[1,128], index: 2, kind: input, shape index: {}]
  %s3 = inlined_call_operand.hbm [shape: bf16[128,128], index: 3, kind: input, shape index: {}]
  %s4 = inlined_call_operand.vmem [shape: f32[1,128], index: 4, kind: input, shape index: {}]
  %s5 = inlined_call_operand.hbm [shape: bf16[128,128], index: 5, kind: input, shape index: {}]
  %s6 = inlined_call_operand.vmem [shape: f32[1,128], index: 6, kind: input, shape index: {}]
  %s7 = inlined_call_operand.hbm [shape: bf16[128,128], index: 7, kind: input, shape index: {}]
  %s8 = inlined_call_operand.vmem [shape: f32[1,128], index: 8, kind: input, shape index: {}]
  %s9 = inlined_call_operand.hbm [shape: f32[8,128], index: 9, kind: output, shape index: {}]
  %s10 = sld [smem:[#allocation0]]
  $region62: #{_mlp_forward_impl.1} parent=0
    _
  %s12 = ssub.s32 1, %s10
  %s13 = scalar_select 0, %s12, %s10
  $region1: #{_mlp_forward_impl.1} parent=0
    #allocation2 [shape = 'u8[32768]{0}', space=vmem, size = 0x8000, scoped, tag = 'input window, operand 1, single buffered']
    #allocation3 [shape = 's32[1]{0}', space=sflag, size = 0x4, scoped, tag = 'scoped memory for _mlp_forward_impl.1']
    #allocation4 [shape = 's32[1]{0}', space=sflag, size = 0x4, scoped, tag = 'scoped memory for _mlp_forward_impl.1']
    #allocation5 [shape = 'u8[32768]{0}', space=vmem, size = 0x8000, scoped, tag = 'input window, operand 3, single buffered']
    #allocation6 [shape = 's32[1]{0}', space=sflag, size = 0x4, scoped, tag = 'scoped memory for _mlp_forward_impl.1']
    #allocation7 [shape = 'u8[32768]{0}', space=vmem, size = 0x8000, scoped, tag = 'input window, operand 5, single buffered']
    #allocation8 [shape = 'u8[32768]{0}', space=vmem, size = 0x8000, scoped, tag = 'input window, operand 7, single buffered']
    #allocation9 [shape = 's32[1]{0}', space=sflag, size = 0x4, scoped, tag = 'scoped memory for _mlp_forward_impl.1']
    #allocation10 [shape = 'u8[4096]{0}', space=vmem, size = 0x1000, scoped, tag = 'output window, operand 0, single buffered']
    %14 = vsyncpa [#allocation3], 0
    %15 = vsyncpa [#allocation6], 0
    %16 = vsyncpa [#allocation9], 0
    %17 = vsyncpa [#allocation4], 0
    // Predicated region
    $region2: #{_mlp_forward_impl.1} parent=1 // pred_check
      _
    $region3: #{_mlp_forward_impl.1} parent=1 // pred_check_branch
      %19 = sbr.rel (0) target = $region5
    $region4: #{_mlp_forward_impl.1} parent=1 // pred_region
      _
    $region5: #{_mlp_forward_impl.1} parent=1 // pred_fallthru
      _
    // Predicated region
    $region6: #{_mlp_forward_impl.1} parent=1 // pred_check
      _
    $region7: #{_mlp_forward_impl.1} parent=1 // pred_check_branch
      %21 = sbr.rel (0) target = $region9
    $region8: #{_mlp_forward_impl.1} parent=1 // pred_region
      %23 = vsyncadd [#allocation3], 0
      %s24 = sshll.u32 %s1, 4
      %s25 = int_to_ptr.hbm [resolvable:$true] %s24
      %s26 = sshll.u32 [#allocation2], 4
      %s27 = int_to_ptr.vmem [resolvable:$true] %s26
      %32 = dma.hbm_to_vmem [thread:$0]  %s25, 1024, %s27, [#allocation3], 64, 64, 4
    $region9: #{_mlp_forward_impl.1} parent=1 // pred_fallthru
      _
    // Predicated region
    $region10: #{_mlp_forward_impl.1} parent=1 // pred_check
      _
    $region11: #{_mlp_forward_impl.1} parent=1 // pred_check_branch
      %34 = sbr.rel (0) target = $region13
    $region12: #{_mlp_forward_impl.1} parent=1 // pred_region
      _
    $region13: #{_mlp_forward_impl.1} parent=1 // pred_fallthru
      _
    // Predicated region
    $region14: #{_mlp_forward_impl.1} parent=1 // pred_check
      _
    $region15: #{_mlp_forward_impl.1} parent=1 // pred_check_branch
      %36 = sbr.rel (0) target = $region17
    $region16: #{_mlp_forward_impl.1} parent=1 // pred_region
      %38 = vsyncadd [#allocation6], 0
      %s39 = sshll.u32 %s3, 4
      %s40 = int_to_ptr.hbm [resolvable:$true] %s39
      %s41 = sshll.u32 [#allocation5], 4
      %s42 = int_to_ptr.vmem [resolvable:$true] %s41
      %47 = dma.hbm_to_vmem [thread:$0]  %s40, 1024, %s42, [#allocation6], 64, 64, 4
    $region17: #{_mlp_forward_impl.1} parent=1 // pred_fallthru
      _
    // Predicated region
    $region18: #{_mlp_forward_impl.1} parent=1 // pred_check
      _
    $region19: #{_mlp_forward_impl.1} parent=1 // pred_check_branch
      %49 = sbr.rel (0) target = $region21
    $region20: #{_mlp_forward_impl.1} parent=1 // pred_region
      _
    $region21: #{_mlp_forward_impl.1} parent=1 // pred_fallthru
      _
    // Predicated region
    $region22: #{_mlp_forward_impl.1} parent=1 // pred_check
      _
    $region23: #{_mlp_forward_impl.1} parent=1 // pred_check_branch
      %51 = sbr.rel (0) target = $region25
    $region24: #{_mlp_forward_impl.1} parent=1 // pred_region
      %53 = vsyncadd [#allocation6], 0
      %s54 = sshll.u32 %s5, 4
      %s55 = int_to_ptr.hbm [resolvable:$true] %s54
      %s56 = sshll.u32 [#allocation7], 4
      %s57 = int_to_ptr.vmem [resolvable:$true] %s56
      %62 = dma.hbm_to_vmem [thread:$0]  %s55, 1024, %s57, [#allocation6], 64, 64, 4
    $region25: #{_mlp_forward_impl.1} parent=1 // pred_fallthru
      _
    // Predicated region
    $region26: #{_mlp_forward_impl.1} parent=1 // pred_check
      _
    $region27: #{_mlp_forward_impl.1} parent=1 // pred_check_branch
      %64 = sbr.rel (0) target = $region29
    $region28: #{_mlp_forward_impl.1} parent=1 // pred_region
      _
    $region29: #{_mlp_forward_impl.1} parent=1 // pred_fallthru
      _
    // Predicated region
    $region30: #{_mlp_forward_impl.1} parent=1 // pred_check
      _
    $region31: #{_mlp_forward_impl.1} parent=1 // pred_check_branch
      %66 = sbr.rel (0) target = $region33
    $region32: #{_mlp_forward_impl.1} parent=1 // pred_region
      %68 = vsyncadd [#allocation9], 0
      %s69 = sshll.u32 %s7, 4
      %s70 = int_to_ptr.hbm [resolvable:$true] %s69
      %s71 = sshll.u32 [#allocation8], 4
      %s72 = int_to_ptr.vmem [resolvable:$true] %s71
      %77 = dma.hbm_to_vmem [thread:$0]  %s70, 1024, %s72, [#allocation9], 64, 64, 4
    $region33: #{_mlp_forward_impl.1} parent=1 // pred_fallthru
      _
    // Predicated region
    $region34: #{_mlp_forward_impl.1} parent=1 // pred_check
      _
    $region35: #{_mlp_forward_impl.1} parent=1 // pred_check_branch
      %79 = sbr.rel (0) target = $region37
    $region36: #{_mlp_forward_impl.1} parent=1 // pred_region
      _
    $region37: #{_mlp_forward_impl.1} parent=1 // pred_fallthru
      _
    // Predicated region
    $region38: #{_mlp_forward_impl.1} parent=1 // pred_check
      _
    $region39: #{_mlp_forward_impl.1} parent=1 // pred_check_branch
      %81 = sbr.rel (0) target = $region41
    $region40: #{_mlp_forward_impl.1} parent=1 // pred_region
      %83 = dma.done [#allocation3], 1024
    $region41: #{_mlp_forward_impl.1} parent=1 // pred_fallthru
      _
    // Predicated region
    $region42: #{_mlp_forward_impl.1} parent=1 // pred_check
      _
    $region43: #{_mlp_forward_impl.1} parent=1 // pred_check_branch
      %85 = sbr.rel (0) target = $region45
    $region44: #{_mlp_forward_impl.1} parent=1 // pred_region
      %87 = dma.done [#allocation6], 1024
    $region45: #{_mlp_forward_impl.1} parent=1 // pred_fallthru
      _
    // Predicated region
    $region46: #{_mlp_forward_impl.1} parent=1 // pred_check
      _
    $region47: #{_mlp_forward_impl.1} parent=1 // pred_check_branch
      %89 = sbr.rel (0) target = $region49
    $region48: #{_mlp_forward_impl.1} parent=1 // pred_region
      %91 = dma.done [#allocation6], 1024
    $region49: #{_mlp_forward_impl.1} parent=1 // pred_fallthru
      _
    // Predicated region
    $region50: #{_mlp_forward_impl.1} parent=1 // pred_check
      _
    $region51: #{_mlp_forward_impl.1} parent=1 // pred_check_branch
      %93 = sbr.rel (0) target = $region53
    $region52: #{_mlp_forward_impl.1} parent=1 // pred_region
      %95 = dma.done [#allocation9], 1024
    $region53: #{_mlp_forward_impl.1} parent=1 // pred_fallthru
      _
    %v96 = vld [vmem:[%s0] sm:$0xff]
    %v97 = vpack.c.bf16 %v96, %v96
    %v98 = vld [vmem:[#allocation2] sm:$0xf]
    %v99 = vld [vmem:[#allocation2 + $0x4] sm:$0xf]
    %v100 = vld [vmem:[#allocation2 + $0x8] sm:$0xf]
    %v101 = vld [vmem:[#allocation2 + $0xc] sm:$0xf]
    %v102 = vld [vmem:[#allocation2 + $0x10] sm:$0xf]
    %v103 = vld [vmem:[#allocation2 + $0x14] sm:$0xf]
    %v104 = vld [vmem:[#allocation2 + $0x18] sm:$0xf]
    %v105 = vld [vmem:[#allocation2 + $0x1c] sm:$0xf]
    %v106 = vld [vmem:[#allocation2 + $0x20] sm:$0xf]
    %v107 = vld [vmem:[#allocation2 + $0x24] sm:$0xf]
    %v108 = vld [vmem:[#allocation2 + $0x28] sm:$0xf]
    %v109 = vld [vmem:[#allocation2 + $0x2c] sm:$0xf]
    %v110 = vld [vmem:[#allocation2 + $0x30] sm:$0xf]
    %v111 = vld [vmem:[#allocation2 + $0x34] sm:$0xf]
    %v112 = vld [vmem:[#allocation2 + $0x38] sm:$0xf]
    %v113 = vld [vmem:[#allocation2 + $0x3c] sm:$0xf]
    %v114 = vld [vmem:[%s2] sm:$0x1]
    %v116 = vperm.slane %v114, 0
    %v134 = vunpack.c.l.b16 %v98
    %v135 = vunpack.c.l.b16 %v99
    %v136 = vunpack.c.l.b16 %v100
    %v137 = vunpack.c.l.b16 %v101
    %v138 = vunpack.c.l.b16 %v102
    %v139 = vunpack.c.l.b16 %v103
    %v140 = vunpack.c.l.b16 %v104
    %v141 = vunpack.c.l.b16 %v105
    %v142 = vunpack.c.l.b16 %v106
    %v143 = vunpack.c.l.b16 %v107
    %v144 = vunpack.c.l.b16 %v108
    %v145 = vunpack.c.l.b16 %v109
    %v146 = vunpack.c.l.b16 %v110
    %v147 = vunpack.c.l.b16 %v111
    %v148 = vunpack.c.l.b16 %v112
    %v149 = vunpack.c.l.b16 %v113
    %v150 = vpack.c.b16 %v135, %v134
    %v151 = vpack.c.b16 %v137, %v136
    %v152 = vpack.c.b16 %v139, %v138
    %v153 = vpack.c.b16 %v141, %v140
    %v154 = vpack.c.b16 %v143, %v142
    %v155 = vpack.c.b16 %v145, %v144
    %v156 = vpack.c.b16 %v147, %v146
    %v157 = vpack.c.b16 %v149, %v148
    %166 = vmatpush.bf16.msra.mxu0 %v157
    %167 = vmatpush.bf16.msra.mxu0 %v156
    %168 = vmatpush.bf16.msra.mxu0 %v155
    %169 = vmatpush.bf16.msra.mxu0 %v154
    %170 = vmatpush.bf16.msra.mxu0 %v153
    %171 = vmatpush.bf16.msra.mxu0 %v152
    %172 = vmatpush.bf16.msra.mxu0 %v151
    %173 = vmatpush.bf16.msra.mxu0 %v150
    %174 = vmatmul.bf16.gmra.mxu0 %v97
    %v175 = vpop.f32.mrf.mxu0
    %v176 = vadd.f32 %v116, %v175
    %v177 = vpop.f32.mrf.mxu0
    %178 = vdwg.mxu0
    %v179 = vpack.c.bf16 %v176, %v176
    %v180 = vld [vmem:[#allocation5] sm:$0xf]
    %v181 = vld [vmem:[#allocation5 + $0x4] sm:$0xf]
    %v182 = vld [vmem:[#allocation5 + $0x8] sm:$0xf]
    %v183 = vld [vmem:[#allocation5 + $0xc] sm:$0xf]
    %v184 = vld [vmem:[#allocation5 + $0x10] sm:$0xf]
    %v185 = vld [vmem:[#allocation5 + $0x14] sm:$0xf]
    %v186 = vld [vmem:[#allocation5 + $0x18] sm:$0xf]
    %v187 = vld [vmem:[#allocation5 + $0x1c] sm:$0xf]
    %v188 = vld [vmem:[#allocation5 + $0x20] sm:$0xf]
    %v189 = vld [vmem:[#allocation5 + $0x24] sm:$0xf]
    %v190 = vld [vmem:[#allocation5 + $0x28] sm:$0xf]
    %v191 = vld [vmem:[#allocation5 + $0x2c] sm:$0xf]
    %v192 = vld [vmem:[#allocation5 + $0x30] sm:$0xf]
    %v193 = vld [vmem:[#allocation5 + $0x34] sm:$0xf]
    %v194 = vld [vmem:[#allocation5 + $0x38] sm:$0xf]
    %v195 = vld [vmem:[#allocation5 + $0x3c] sm:$0xf]
    %v196 = vld [vmem:[%s4] sm:$0x1]
    %v198 = vperm.slane %v196, 0
    %v216 = vunpack.c.l.b16 %v180
    %v217 = vunpack.c.l.b16 %v181
    %v218 = vunpack.c.l.b16 %v182
    %v219 = vunpack.c.l.b16 %v183
    %v220 = vunpack.c.l.b16 %v184
    %v221 = vunpack.c.l.b16 %v185
    %v222 = vunpack.c.l.b16 %v186
    %v223 = vunpack.c.l.b16 %v187
    %v224 = vunpack.c.l.b16 %v188
    %v225 = vunpack.c.l.b16 %v189
    %v226 = vunpack.c.l.b16 %v190
    %v227 = vunpack.c.l.b16 %v191
    %v228 = vunpack.c.l.b16 %v192
    %v229 = vunpack.c.l.b16 %v193
    %v230 = vunpack.c.l.b16 %v194
    %v231 = vunpack.c.l.b16 %v195
    %v232 = vpack.c.b16 %v217, %v216
    %v233 = vpack.c.b16 %v219, %v218
    %v234 = vpack.c.b16 %v221, %v220
    %v235 = vpack.c.b16 %v223, %v222
    %v236 = vpack.c.b16 %v225, %v224
    %v237 = vpack.c.b16 %v227, %v226
    %v238 = vpack.c.b16 %v229, %v228
    %v239 = vpack.c.b16 %v231, %v230
    %248 = vmatpush.bf16.msra.mxu0 %v239
    %249 = vmatpush.bf16.msra.mxu0 %v238
    %250 = vmatpush.bf16.msra.mxu0 %v237
    %251 = vmatpush.bf16.msra.mxu0 %v236
    %252 = vmatpush.bf16.msra.mxu0 %v235
    %253 = vmatpush.bf16.msra.mxu0 %v234
    %254 = vmatpush.bf16.msra.mxu0 %v233
    %255 = vmatpush.bf16.msra.mxu0 %v232
    %256 = vmatmul.bf16.gmra.mxu0 %v179
    %v257 = vpop.f32.mrf.mxu0
    %v258 = vadd.f32 %v198, %v257
    %v259 = vpop.f32.mrf.mxu0
    %260 = vdwg.mxu0
    %v261 = vpack.c.bf16 %v258, %v258
    %v262 = vld [vmem:[#allocation7] sm:$0xf]
    %v263 = vld [vmem:[#allocation7 + $0x4] sm:$0xf]
    %v264 = vld [vmem:[#allocation7 + $0x8] sm:$0xf]
    %v265 = vld [vmem:[#allocation7 + $0xc] sm:$0xf]
    %v266 = vld [vmem:[#allocation7 + $0x10] sm:$0xf]
    %v267 = vld [vmem:[#allocation7 + $0x14] sm:$0xf]
    %v268 = vld [vmem:[#allocation7 + $0x18] sm:$0xf]
    %v269 = vld [vmem:[#allocation7 + $0x1c] sm:$0xf]
    %v270 = vld [vmem:[#allocation7 + $0x20] sm:$0xf]
    %v271 = vld [vmem:[#allocation7 + $0x24] sm:$0xf]
    %v272 = vld [vmem:[#allocation7 + $0x28] sm:$0xf]
    %v273 = vld [vmem:[#allocation7 + $0x2c] sm:$0xf]
    %v274 = vld [vmem:[#allocation7 + $0x30] sm:$0xf]
    %v275 = vld [vmem:[#allocation7 + $0x34] sm:$0xf]
    %v276 = vld [vmem:[#allocation7 + $0x38] sm:$0xf]
    %v277 = vld [vmem:[#allocation7 + $0x3c] sm:$0xf]
    %v278 = vld [vmem:[%s6] sm:$0x1]
    %v280 = vperm.slane %v278, 0
    %v298 = vunpack.c.l.b16 %v262
    %v299 = vunpack.c.l.b16 %v263
    %v300 = vunpack.c.l.b16 %v264
    %v301 = vunpack.c.l.b16 %v265
    %v302 = vunpack.c.l.b16 %v266
    %v303 = vunpack.c.l.b16 %v267
    %v304 = vunpack.c.l.b16 %v268
    %v305 = vunpack.c.l.b16 %v269
    %v306 = vunpack.c.l.b16 %v270
    %v307 = vunpack.c.l.b16 %v271
    %v308 = vunpack.c.l.b16 %v272
    %v309 = vunpack.c.l.b16 %v273
    %v310 = vunpack.c.l.b16 %v274
    %v311 = vunpack.c.l.b16 %v275
    %v312 = vunpack.c.l.b16 %v276
    %v313 = vunpack.c.l.b16 %v277
    %v314 = vpack.c.b16 %v299, %v298
    %v315 = vpack.c.b16 %v301, %v300
    %v316 = vpack.c.b16 %v303, %v302
    %v317 = vpack.c.b16 %v305, %v304
    %v318 = vpack.c.b16 %v307, %v306
    %v319 = vpack.c.b16 %v309, %v308
    %v320 = vpack.c.b16 %v311, %v310
    %v321 = vpack.c.b16 %v313, %v312
    %330 = vmatpush.bf16.msra.mxu0 %v321
    %331 = vmatpush.bf16.msra.mxu0 %v320
    %332 = vmatpush.bf16.msra.mxu0 %v319
    %333 = vmatpush.bf16.msra.mxu0 %v318
    %334 = vmatpush.bf16.msra.mxu0 %v317
    %335 = vmatpush.bf16.msra.mxu0 %v316
    %336 = vmatpush.bf16.msra.mxu0 %v315
    %337 = vmatpush.bf16.msra.mxu0 %v314
    %338 = vmatmul.bf16.gmra.mxu0 %v261
    %v339 = vpop.f32.mrf.mxu0
    %v340 = vadd.f32 %v280, %v339
    %v341 = vpop.f32.mrf.mxu0
    %342 = vdwg.mxu0
    %v343 = vpack.c.bf16 %v340, %v340
    %v344 = vld [vmem:[#allocation8] sm:$0xf]
    %v345 = vld [vmem:[#allocation8 + $0x4] sm:$0xf]
    %v346 = vld [vmem:[#allocation8 + $0x8] sm:$0xf]
    %v347 = vld [vmem:[#allocation8 + $0xc] sm:$0xf]
    %v348 = vld [vmem:[#allocation8 + $0x10] sm:$0xf]
    %v349 = vld [vmem:[#allocation8 + $0x14] sm:$0xf]
    %v350 = vld [vmem:[#allocation8 + $0x18] sm:$0xf]
    %v351 = vld [vmem:[#allocation8 + $0x1c] sm:$0xf]
    %v352 = vld [vmem:[#allocation8 + $0x20] sm:$0xf]
    %v353 = vld [vmem:[#allocation8 + $0x24] sm:$0xf]
    %v354 = vld [vmem:[#allocation8 + $0x28] sm:$0xf]
    %v355 = vld [vmem:[#allocation8 + $0x2c] sm:$0xf]
    %v356 = vld [vmem:[#allocation8 + $0x30] sm:$0xf]
    %v357 = vld [vmem:[#allocation8 + $0x34] sm:$0xf]
    %v358 = vld [vmem:[#allocation8 + $0x38] sm:$0xf]
    %v359 = vld [vmem:[#allocation8 + $0x3c] sm:$0xf]
    %v360 = vld [vmem:[%s8] sm:$0x1]
    %v362 = vperm.slane %v360, 0
    %v380 = vunpack.c.l.b16 %v344
    %v381 = vunpack.c.l.b16 %v345
    %v382 = vunpack.c.l.b16 %v346
    %v383 = vunpack.c.l.b16 %v347
    %v384 = vunpack.c.l.b16 %v348
    %v385 = vunpack.c.l.b16 %v349
    %v386 = vunpack.c.l.b16 %v350
    %v387 = vunpack.c.l.b16 %v351
    %v388 = vunpack.c.l.b16 %v352
    %v389 = vunpack.c.l.b16 %v353
    %v390 = vunpack.c.l.b16 %v354
    %v391 = vunpack.c.l.b16 %v355
    %v392 = vunpack.c.l.b16 %v356
    %v393 = vunpack.c.l.b16 %v357
    %v394 = vunpack.c.l.b16 %v358
    %v395 = vunpack.c.l.b16 %v359
    %v396 = vpack.c.b16 %v381, %v380
    %v397 = vpack.c.b16 %v383, %v382
    %v398 = vpack.c.b16 %v385, %v384
    %v399 = vpack.c.b16 %v387, %v386
    %v400 = vpack.c.b16 %v389, %v388
    %v401 = vpack.c.b16 %v391, %v390
    %v402 = vpack.c.b16 %v393, %v392
    %v403 = vpack.c.b16 %v395, %v394
    %412 = vmatpush.bf16.msra.mxu0 %v403
    %413 = vmatpush.bf16.msra.mxu0 %v402
    %414 = vmatpush.bf16.msra.mxu0 %v401
    %415 = vmatpush.bf16.msra.mxu0 %v400
    %416 = vmatpush.bf16.msra.mxu0 %v399
    %417 = vmatpush.bf16.msra.mxu0 %v398
    %418 = vmatpush.bf16.msra.mxu0 %v397
    %419 = vmatpush.bf16.msra.mxu0 %v396
    %420 = vmatmul.bf16.gmra.mxu0 %v343
    %v421 = vpop.f32.mrf.mxu0
    %v422 = vadd.f32 %v362, %v421
    %v423 = vpop.f32.mrf.mxu0
    %424 = vdwg.mxu0
    %425 = vst [vmem:[#allocation10] sm:$0xff] %v422
    // Predicated region
    $region54: #{_mlp_forward_impl.1} parent=1 // pred_check
      _
    $region55: #{_mlp_forward_impl.1} parent=1 // pred_check_branch
      %427 = sbr.rel (0) target = $region57
    $region56: #{_mlp_forward_impl.1} parent=1 // pred_region
      %429 = vsyncadd [#allocation4], 0
      %s431 = sshll.u32 [#allocation10], 4
      %s432 = int_to_ptr.vmem [resolvable:$true] %s431
      %s433 = sshll.u32 %s9, 4
      %s434 = int_to_ptr.hbm [resolvable:$true] %s433
      %436 = dma.vmem_to_hbm [thread:$0]  %s432, 128, %s434, [#allocation4]
    $region57: #{_mlp_forward_impl.1} parent=1 // pred_fallthru
      _
    // Predicated region
    $region58: #{_mlp_forward_impl.1} parent=1 // pred_check
      _
    $region59: #{_mlp_forward_impl.1} parent=1 // pred_check_branch
      %438 = sbr.rel (0) target = $region61
    $region60: #{_mlp_forward_impl.1} parent=1 // pred_region
      %440 = dma.done [#allocation4], 128
    $region61: #{_mlp_forward_impl.1} parent=1 // pred_fallthru
      _
    %441 = vsyncpa [#allocation3], 1
    %442 = vsyncpa [#allocation6], 1
    %443 = vsyncpa [#allocation9], 1
    %444 = vsyncpa [#allocation4], 1

// kernel: _mlp_forward_impl.1
$region0: #{_mlp_forward_impl.1}
  #allocation0 [shape = 'u32[]', space=smem, size = 0x4, offset = 0x4, fixed_abs, tag = 'smem constant byte address 0x4 - core index']
  #allocation1 [shape = 'u32[72,128]{1,0:T(1,128)}', space=vmem, size = 0x9000, scoped, tag = 'internal scratch']
  %s0 = inlined_call_operand.vmem [shape: f32[8,128], index: 0, kind: input, shape index: {}]
  %s1 = inlined_call_operand.hbm [shape: bf16[128,128], index: 1, kind: input, shape index: {}]
  %s2 = inlined_call_operand.vmem [shape: f32[1,128], index: 2, kind: input, shape index: {}]
  %s3 = inlined_call_operand.hbm [shape: bf16[128,128], index: 3, kind: input, shape index: {}]
  %s4 = inlined_call_operand.vmem [shape: f32[1,128], index: 4, kind: input, shape index: {}]
  %s5 = inlined_call_operand.hbm [shape: bf16[128,128], index: 5, kind: input, shape index: {}]
  %s6 = inlined_call_operand.vmem [shape: f32[1,128], index: 6, kind: input, shape index: {}]
  %s7 = inlined_call_operand.hbm [shape: bf16[128,128], index: 7, kind: input, shape index: {}]
  %s8 = inlined_call_operand.vmem [shape: f32[1,128], index: 8, kind: input, shape index: {}]
  %s9 = inlined_call_operand.hbm [shape: f32[8,128], index: 9, kind: output, shape index: {}]
  %s10 = sld [smem:[#allocation0]]
  $region62: #{_mlp_forward_impl.1} parent=0
    _
  %s12 = ssub.s32 1, %s10
  %s13 = scalar_select 0, %s12, %s10
  $region1: #{_mlp_forward_impl.1} parent=0
    #allocation2 [shape = 'u8[32768]{0}', space=vmem, size = 0x8000, scoped, tag = 'input window, operand 1, single buffered']
    #allocation3 [shape = 's32[1]{0}', space=sflag, size = 0x4, scoped, tag = 'scoped memory for _mlp_forward_impl.1']
    #allocation4 [shape = 's32[1]{0}', space=sflag, size = 0x4, scoped, tag = 'scoped memory for _mlp_forward_impl.1']
    #allocation5 [shape = 'u8[32768]{0}', space=vmem, size = 0x8000, scoped, tag = 'input window, operand 3, single buffered']
    #allocation6 [shape = 's32[1]{0}', space=sflag, size = 0x4, scoped, tag = 'scoped memory for _mlp_forward_impl.1']
    #allocation7 [shape = 'u8[32768]{0}', space=vmem, size = 0x8000, scoped, tag = 'input window, operand 5, single buffered']
    #allocation8 [shape = 'u8[32768]{0}', space=vmem, size = 0x8000, scoped, tag = 'input window, operand 7, single buffered']
    #allocation9 [shape = 's32[1]{0}', space=sflag, size = 0x4, scoped, tag = 'scoped memory for _mlp_forward_impl.1']
    #allocation10 [shape = 'u8[4096]{0}', space=vmem, size = 0x1000, scoped, tag = 'output window, operand 0, single buffered']
    %14 = vsyncpa [#allocation3], 0
    %15 = vsyncpa [#allocation6], 0
    %16 = vsyncpa [#allocation9], 0
    %17 = vsyncpa [#allocation4], 0
    // Predicated region
    $region2: #{_mlp_forward_impl.1} parent=1 // pred_check
      _
    $region3: #{_mlp_forward_impl.1} parent=1 // pred_check_branch
      %19 = sbr.rel (0) target = $region5
    $region4: #{_mlp_forward_impl.1} parent=1 // pred_region
      _
    $region5: #{_mlp_forward_impl.1} parent=1 // pred_fallthru
      _
    // Predicated region
    $region6: #{_mlp_forward_impl.1} parent=1 // pred_check
      _
    $region7: #{_mlp_forward_impl.1} parent=1 // pred_check_branch
      %21 = sbr.rel (0) target = $region9
    $region8: #{_mlp_forward_impl.1} parent=1 // pred_region
      %23 = vsyncadd [#allocation3], 0
      %s24 = sshll.u32 %s1, 4
      %s25 = int_to_ptr.hbm [resolvable:$true] %s24
      %s26 = sshll.u32 [#allocation2], 4
      %s27 = int_to_ptr.vmem [resolvable:$true] %s26
      %32 = dma.hbm_to_vmem [thread:$0]  %s25, 1024, %s27, [#allocation3], 64, 64, 4
    $region9: #{_mlp_forward_impl.1} parent=1 // pred_fallthru
      _
    // Predicated region
    $region10: #{_mlp_forward_impl.1} parent=1 // pred_check
      _
    $region11: #{_mlp_forward_impl.1} parent=1 // pred_check_branch
      %34 = sbr.rel (0) target = $region13
    $region12: #{_mlp_forward_impl.1} parent=1 // pred_region
      _
    $region13: #{_mlp_forward_impl.1} parent=1 // pred_fallthru
      _
    // Predicated region
    $region14: #{_mlp_forward_impl.1} parent=1 // pred_check
      _
    $region15: #{_mlp_forward_impl.1} parent=1 // pred_check_branch
      %36 = sbr.rel (0) target = $region17
    $region16: #{_mlp_forward_impl.1} parent=1 // pred_region
      %38 = vsyncadd [#allocation6], 0
      %s39 = sshll.u32 %s3, 4
      %s40 = int_to_ptr.hbm [resolvable:$true] %s39
      %s41 = sshll.u32 [#allocation5], 4
      %s42 = int_to_ptr.vmem [resolvable:$true] %s41
      %47 = dma.hbm_to_vmem [thread:$0]  %s40, 1024, %s42, [#allocation6], 64, 64, 4
    $region17: #{_mlp_forward_impl.1} parent=1 // pred_fallthru
      _
    // Predicated region
    $region18: #{_mlp_forward_impl.1} parent=1 // pred_check
      _
    $region19: #{_mlp_forward_impl.1} parent=1 // pred_check_branch
      %49 = sbr.rel (0) target = $region21
    $region20: #{_mlp_forward_impl.1} parent=1 // pred_region
      _
    $region21: #{_mlp_forward_impl.1} parent=1 // pred_fallthru
      _
    // Predicated region
    $region22: #{_mlp_forward_impl.1} parent=1 // pred_check
      _
    $region23: #{_mlp_forward_impl.1} parent=1 // pred_check_branch
      %51 = sbr.rel (0) target = $region25
    $region24: #{_mlp_forward_impl.1} parent=1 // pred_region
      %53 = vsyncadd [#allocation6], 0
      %s54 = sshll.u32 %s5, 4
      %s55 = int_to_ptr.hbm [resolvable:$true] %s54
      %s56 = sshll.u32 [#allocation7], 4
      %s57 = int_to_ptr.vmem [resolvable:$true] %s56
      %62 = dma.hbm_to_vmem [thread:$0]  %s55, 1024, %s57, [#allocation6], 64, 64, 4
    $region25: #{_mlp_forward_impl.1} parent=1 // pred_fallthru
      _
    // Predicated region
    $region26: #{_mlp_forward_impl.1} parent=1 // pred_check
      _
    $region27: #{_mlp_forward_impl.1} parent=1 // pred_check_branch
      %64 = sbr.rel (0) target = $region29
    $region28: #{_mlp_forward_impl.1} parent=1 // pred_region
      _
    $region29: #{_mlp_forward_impl.1} parent=1 // pred_fallthru
      _
    // Predicated region
    $region30: #{_mlp_forward_impl.1} parent=1 // pred_check
      _
    $region31: #{_mlp_forward_impl.1} parent=1 // pred_check_branch
      %66 = sbr.rel (0) target = $region33
    $region32: #{_mlp_forward_impl.1} parent=1 // pred_region
      %68 = vsyncadd [#allocation9], 0
      %s69 = sshll.u32 %s7, 4
      %s70 = int_to_ptr.hbm [resolvable:$true] %s69
      %s71 = sshll.u32 [#allocation8], 4
      %s72 = int_to_ptr.vmem [resolvable:$true] %s71
      %77 = dma.hbm_to_vmem [thread:$0]  %s70, 1024, %s72, [#allocation9], 64, 64, 4
    $region33: #{_mlp_forward_impl.1} parent=1 // pred_fallthru
      _
    // Predicated region
    $region34: #{_mlp_forward_impl.1} parent=1 // pred_check
      _
    $region35: #{_mlp_forward_impl.1} parent=1 // pred_check_branch
      %79 = sbr.rel (0) target = $region37
    $region36: #{_mlp_forward_impl.1} parent=1 // pred_region
      _
    $region37: #{_mlp_forward_impl.1} parent=1 // pred_fallthru
      _
    // Predicated region
    $region38: #{_mlp_forward_impl.1} parent=1 // pred_check
      _
    $region39: #{_mlp_forward_impl.1} parent=1 // pred_check_branch
      %81 = sbr.rel (0) target = $region41
    $region40: #{_mlp_forward_impl.1} parent=1 // pred_region
      %83 = dma.done [#allocation3], 1024
    $region41: #{_mlp_forward_impl.1} parent=1 // pred_fallthru
      _
    // Predicated region
    $region42: #{_mlp_forward_impl.1} parent=1 // pred_check
      _
    $region43: #{_mlp_forward_impl.1} parent=1 // pred_check_branch
      %85 = sbr.rel (0) target = $region45
    $region44: #{_mlp_forward_impl.1} parent=1 // pred_region
      %87 = dma.done [#allocation6], 1024
    $region45: #{_mlp_forward_impl.1} parent=1 // pred_fallthru
      _
    // Predicated region
    $region46: #{_mlp_forward_impl.1} parent=1 // pred_check
      _
    $region47: #{_mlp_forward_impl.1} parent=1 // pred_check_branch
      %89 = sbr.rel (0) target = $region49
    $region48: #{_mlp_forward_impl.1} parent=1 // pred_region
      %91 = dma.done [#allocation6], 1024
    $region49: #{_mlp_forward_impl.1} parent=1 // pred_fallthru
      _
    // Predicated region
    $region50: #{_mlp_forward_impl.1} parent=1 // pred_check
      _
    $region51: #{_mlp_forward_impl.1} parent=1 // pred_check_branch
      %93 = sbr.rel (0) target = $region53
    $region52: #{_mlp_forward_impl.1} parent=1 // pred_region
      %95 = dma.done [#allocation9], 1024
    $region53: #{_mlp_forward_impl.1} parent=1 // pred_fallthru
      _
    %v96 = vld [vmem:[%s0] sm:$0xff]
    %v97 = vpack.c.bf16 %v96, %v96
    %v98 = vld [vmem:[#allocation2] sm:$0xf]
    %v99 = vld [vmem:[#allocation2 + $0x4] sm:$0xf]
    %v100 = vld [vmem:[#allocation2 + $0x8] sm:$0xf]
    %v101 = vld [vmem:[#allocation2 + $0xc] sm:$0xf]
    %v102 = vld [vmem:[#allocation2 + $0x10] sm:$0xf]
    %v103 = vld [vmem:[#allocation2 + $0x14] sm:$0xf]
    %v104 = vld [vmem:[#allocation2 + $0x18] sm:$0xf]
    %v105 = vld [vmem:[#allocation2 + $0x1c] sm:$0xf]
    %v106 = vld [vmem:[#allocation2 + $0x20] sm:$0xf]
    %v107 = vld [vmem:[#allocation2 + $0x24] sm:$0xf]
    %v108 = vld [vmem:[#allocation2 + $0x28] sm:$0xf]
    %v109 = vld [vmem:[#allocation2 + $0x2c] sm:$0xf]
    %v110 = vld [vmem:[#allocation2 + $0x30] sm:$0xf]
    %v111 = vld [vmem:[#allocation2 + $0x34] sm:$0xf]
    %v112 = vld [vmem:[#allocation2 + $0x38] sm:$0xf]
    %v113 = vld [vmem:[#allocation2 + $0x3c] sm:$0xf]
    %v114 = vld [vmem:[%s2] sm:$0x1]
    %v116 = vperm.slane %v114, 0
    %v134 = vunpack.c.l.b16 %v98
    %v135 = vunpack.c.l.b16 %v99
    %v136 = vunpack.c.l.b16 %v100
    %v137 = vunpack.c.l.b16 %v101
    %v138 = vunpack.c.l.b16 %v102
    %v139 = vunpack.c.l.b16 %v103
    %v140 = vunpack.c.l.b16 %v104
    %v141 = vunpack.c.l.b16 %v105
    %v142 = vunpack.c.l.b16 %v106
    %v143 = vunpack.c.l.b16 %v107
    %v144 = vunpack.c.l.b16 %v108
    %v145 = vunpack.c.l.b16 %v109
    %v146 = vunpack.c.l.b16 %v110
    %v147 = vunpack.c.l.b16 %v111
    %v148 = vunpack.c.l.b16 %v112
    %v149 = vunpack.c.l.b16 %v113
    %v150 = vpack.c.b16 %v135, %v134
    %v151 = vpack.c.b16 %v137, %v136
    %v152 = vpack.c.b16 %v139, %v138
    %v153 = vpack.c.b16 %v141, %v140
    %v154 = vpack.c.b16 %v143, %v142
    %v155 = vpack.c.b16 %v145, %v144
    %v156 = vpack.c.b16 %v147, %v146
    %v157 = vpack.c.b16 %v149, %v148
    %166 = vmatpush.bf16.msra.mxu0 %v157
    %167 = vmatpush.bf16.msra.mxu0 %v156
    %168 = vmatpush.bf16.msra.mxu0 %v155
    %169 = vmatpush.bf16.msra.mxu0 %v154
    %170 = vmatpush.bf16.msra.mxu0 %v153
    %171 = vmatpush.bf16.msra.mxu0 %v152
    %172 = vmatpush.bf16.msra.mxu0 %v151
    %173 = vmatpush.bf16.msra.mxu0 %v150
    %174 = vmatmul.bf16.gmra.mxu0 %v97
    %v175 = vpop.f32.mrf.mxu0
    %v176 = vadd.f32 %v116, %v175
    %v177 = vpop.f32.mrf.mxu0
    %178 = vdwg.mxu0
    %v179 = vpack.c.bf16 %v176, %v176
    %v180 = vld [vmem:[#allocation5] sm:$0xf]
    %v181 = vld [vmem:[#allocation5 + $0x4] sm:$0xf]
    %v182 = vld [vmem:[#allocation5 + $0x8] sm:$0xf]
    %v183 = vld [vmem:[#allocation5 + $0xc] sm:$0xf]
    %v184 = vld [vmem:[#allocation5 + $0x10] sm:$0xf]
    %v185 = vld [vmem:[#allocation5 + $0x14] sm:$0xf]
    %v186 = vld [vmem:[#allocation5 + $0x18] sm:$0xf]
    %v187 = vld [vmem:[#allocation5 + $0x1c] sm:$0xf]
    %v188 = vld [vmem:[#allocation5 + $0x20] sm:$0xf]
    %v189 = vld [vmem:[#allocation5 + $0x24] sm:$0xf]
    %v190 = vld [vmem:[#allocation5 + $0x28] sm:$0xf]
    %v191 = vld [vmem:[#allocation5 + $0x2c] sm:$0xf]
    %v192 = vld [vmem:[#allocation5 + $0x30] sm:$0xf]
    %v193 = vld [vmem:[#allocation5 + $0x34] sm:$0xf]
    %v194 = vld [vmem:[#allocation5 + $0x38] sm:$0xf]
    %v195 = vld [vmem:[#allocation5 + $0x3c] sm:$0xf]
    %v196 = vld [vmem:[%s4] sm:$0x1]
    %v198 = vperm.slane %v196, 0
    %v216 = vunpack.c.l.b16 %v180
    %v217 = vunpack.c.l.b16 %v181
    %v218 = vunpack.c.l.b16 %v182
    %v219 = vunpack.c.l.b16 %v183
    %v220 = vunpack.c.l.b16 %v184
    %v221 = vunpack.c.l.b16 %v185
    %v222 = vunpack.c.l.b16 %v186
    %v223 = vunpack.c.l.b16 %v187
    %v224 = vunpack.c.l.b16 %v188
    %v225 = vunpack.c.l.b16 %v189
    %v226 = vunpack.c.l.b16 %v190
    %v227 = vunpack.c.l.b16 %v191
    %v228 = vunpack.c.l.b16 %v192
    %v229 = vunpack.c.l.b16 %v193
    %v230 = vunpack.c.l.b16 %v194
    %v231 = vunpack.c.l.b16 %v195
    %v232 = vpack.c.b16 %v217, %v216
    %v233 = vpack.c.b16 %v219, %v218
    %v234 = vpack.c.b16 %v221, %v220
    %v235 = vpack.c.b16 %v223, %v222
    %v236 = vpack.c.b16 %v225, %v224
    %v237 = vpack.c.b16 %v227, %v226
    %v238 = vpack.c.b16 %v229, %v228
    %v239 = vpack.c.b16 %v231, %v230
    %248 = vmatpush.bf16.msra.mxu0 %v239
    %249 = vmatpush.bf16.msra.mxu0 %v238
    %250 = vmatpush.bf16.msra.mxu0 %v237
    %251 = vmatpush.bf16.msra.mxu0 %v236
    %252 = vmatpush.bf16.msra.mxu0 %v235
    %253 = vmatpush.bf16.msra.mxu0 %v234
    %254 = vmatpush.bf16.msra.mxu0 %v233
    %255 = vmatpush.bf16.msra.mxu0 %v232
    %256 = vmatmul.bf16.gmra.mxu0 %v179
    %v257 = vpop.f32.mrf.mxu0
    %v258 = vadd.f32 %v198, %v257
    %v259 = vpop.f32.mrf.mxu0
    %260 = vdwg.mxu0
    %v261 = vpack.c.bf16 %v258, %v258
    %v262 = vld [vmem:[#allocation7] sm:$0xf]
    %v263 = vld [vmem:[#allocation7 + $0x4] sm:$0xf]
    %v264 = vld [vmem:[#allocation7 + $0x8] sm:$0xf]
    %v265 = vld [vmem:[#allocation7 + $0xc] sm:$0xf]
    %v266 = vld [vmem:[#allocation7 + $0x10] sm:$0xf]
    %v267 = vld [vmem:[#allocation7 + $0x14] sm:$0xf]
    %v268 = vld [vmem:[#allocation7 + $0x18] sm:$0xf]
    %v269 = vld [vmem:[#allocation7 + $0x1c] sm:$0xf]
    %v270 = vld [vmem:[#allocation7 + $0x20] sm:$0xf]
    %v271 = vld [vmem:[#allocation7 + $0x24] sm:$0xf]
    %v272 = vld [vmem:[#allocation7 + $0x28] sm:$0xf]
    %v273 = vld [vmem:[#allocation7 + $0x2c] sm:$0xf]
    %v274 = vld [vmem:[#allocation7 + $0x30] sm:$0xf]
    %v275 = vld [vmem:[#allocation7 + $0x34] sm:$0xf]
    %v276 = vld [vmem:[#allocation7 + $0x38] sm:$0xf]
    %v277 = vld [vmem:[#allocation7 + $0x3c] sm:$0xf]
    %v278 = vld [vmem:[%s6] sm:$0x1]
    %v280 = vperm.slane %v278, 0
    %v298 = vunpack.c.l.b16 %v262
    %v299 = vunpack.c.l.b16 %v263
    %v300 = vunpack.c.l.b16 %v264
    %v301 = vunpack.c.l.b16 %v265
    %v302 = vunpack.c.l.b16 %v266
    %v303 = vunpack.c.l.b16 %v267
    %v304 = vunpack.c.l.b16 %v268
    %v305 = vunpack.c.l.b16 %v269
    %v306 = vunpack.c.l.b16 %v270
    %v307 = vunpack.c.l.b16 %v271
    %v308 = vunpack.c.l.b16 %v272
    %v309 = vunpack.c.l.b16 %v273
    %v310 = vunpack.c.l.b16 %v274
    %v311 = vunpack.c.l.b16 %v275
    %v312 = vunpack.c.l.b16 %v276
    %v313 = vunpack.c.l.b16 %v277
    %v314 = vpack.c.b16 %v299, %v298
    %v315 = vpack.c.b16 %v301, %v300
    %v316 = vpack.c.b16 %v303, %v302
    %v317 = vpack.c.b16 %v305, %v304
    %v318 = vpack.c.b16 %v307, %v306
    %v319 = vpack.c.b16 %v309, %v308
    %v320 = vpack.c.b16 %v311, %v310
    %v321 = vpack.c.b16 %v313, %v312
    %330 = vmatpush.bf16.msra.mxu0 %v321
    %331 = vmatpush.bf16.msra.mxu0 %v320
    %332 = vmatpush.bf16.msra.mxu0 %v319
    %333 = vmatpush.bf16.msra.mxu0 %v318
    %334 = vmatpush.bf16.msra.mxu0 %v317
    %335 = vmatpush.bf16.msra.mxu0 %v316
    %336 = vmatpush.bf16.msra.mxu0 %v315
    %337 = vmatpush.bf16.msra.mxu0 %v314
    %338 = vmatmul.bf16.gmra.mxu0 %v261
    %v339 = vpop.f32.mrf.mxu0
    %v340 = vadd.f32 %v280, %v339
    %v341 = vpop.f32.mrf.mxu0
    %342 = vdwg.mxu0
    %v343 = vpack.c.bf16 %v340, %v340
    %v344 = vld [vmem:[#allocation8] sm:$0xf]
    %v345 = vld [vmem:[#allocation8 + $0x4] sm:$0xf]
    %v346 = vld [vmem:[#allocation8 + $0x8] sm:$0xf]
    %v347 = vld [vmem:[#allocation8 + $0xc] sm:$0xf]
    %v348 = vld [vmem:[#allocation8 + $0x10] sm:$0xf]
    %v349 = vld [vmem:[#allocation8 + $0x14] sm:$0xf]
    %v350 = vld [vmem:[#allocation8 + $0x18] sm:$0xf]
    %v351 = vld [vmem:[#allocation8 + $0x1c] sm:$0xf]
    %v352 = vld [vmem:[#allocation8 + $0x20] sm:$0xf]
    %v353 = vld [vmem:[#allocation8 + $0x24] sm:$0xf]
    %v354 = vld [vmem:[#allocation8 + $0x28] sm:$0xf]
    %v355 = vld [vmem:[#allocation8 + $0x2c] sm:$0xf]
    %v356 = vld [vmem:[#allocation8 + $0x30] sm:$0xf]
    %v357 = vld [vmem:[#allocation8 + $0x34] sm:$0xf]
    %v358 = vld [vmem:[#allocation8 + $0x38] sm:$0xf]
    %v359 = vld [vmem:[#allocation8 + $0x3c] sm:$0xf]
    %v360 = vld [vmem:[%s8] sm:$0x1]
    %v362 = vperm.slane %v360, 0
    %v380 = vunpack.c.l.b16 %v344
    %v381 = vunpack.c.l.b16 %v345
    %v382 = vunpack.c.l.b16 %v346
    %v383 = vunpack.c.l.b16 %v347
    %v384 = vunpack.c.l.b16 %v348
    %v385 = vunpack.c.l.b16 %v349
    %v386 = vunpack.c.l.b16 %v350
    %v387 = vunpack.c.l.b16 %v351
    %v388 = vunpack.c.l.b16 %v352
    %v389 = vunpack.c.l.b16 %v353
    %v390 = vunpack.c.l.b16 %v354
    %v391 = vunpack.c.l.b16 %v355
    %v392 = vunpack.c.l.b16 %v356
    %v393 = vunpack.c.l.b16 %v357
    %v394 = vunpack.c.l.b16 %v358
    %v395 = vunpack.c.l.b16 %v359
    %v396 = vpack.c.b16 %v381, %v380
    %v397 = vpack.c.b16 %v383, %v382
    %v398 = vpack.c.b16 %v385, %v384
    %v399 = vpack.c.b16 %v387, %v386
    %v400 = vpack.c.b16 %v389, %v388
    %v401 = vpack.c.b16 %v391, %v390
    %v402 = vpack.c.b16 %v393, %v392
    %v403 = vpack.c.b16 %v395, %v394
    %412 = vmatpush.bf16.msra.mxu0 %v403
    %413 = vmatpush.bf16.msra.mxu0 %v402
    %414 = vmatpush.bf16.msra.mxu0 %v401
    %415 = vmatpush.bf16.msra.mxu0 %v400
    %416 = vmatpush.bf16.msra.mxu0 %v399
    %417 = vmatpush.bf16.msra.mxu0 %v398
    %418 = vmatpush.bf16.msra.mxu0 %v397
    %419 = vmatpush.bf16.msra.mxu0 %v396
    %420 = vmatmul.bf16.gmra.mxu0 %v343
    %v421 = vpop.f32.mrf.mxu0
    %v422 = vadd.f32 %v362, %v421
    %v423 = vpop.f32.mrf.mxu0
    %424 = vdwg.mxu0
    %425 = vst [vmem:[#allocation10] sm:$0xff] %v422
    // Predicated region
    $region54: #{_mlp_forward_impl.1} parent=1 // pred_check
      _
    $region55: #{_mlp_forward_impl.1} parent=1 // pred_check_branch
      %427 = sbr.rel (0) target = $region57
    $region56: #{_mlp_forward_impl.1} parent=1 // pred_region
      %429 = vsyncadd [#allocation4], 0
      %s431 = sshll.u32 [#allocation10], 4
      %s432 = int_to_ptr.vmem [resolvable:$true] %s431
      %s433 = sshll.u32 %s9, 4
      %s434 = int_to_ptr.hbm [resolvable:$true] %s433
      %436 = dma.vmem_to_hbm [thread:$0]  %s432, 128, %s434, [#allocation4]
    $region57: #{_mlp_forward_impl.1} parent=1 // pred_fallthru
      _
    // Predicated region
    $region58: #{_mlp_forward_impl.1} parent=1 // pred_check
      _
    $region59: #{_mlp_forward_impl.1} parent=1 // pred_check_branch
      %438 = sbr.rel (0) target = $region61
    $region60: #{_mlp_forward_impl.1} parent=1 // pred_region
      %440 = dma.done [#allocation4], 128
    $region61: #{_mlp_forward_impl.1} parent=1 // pred_fallthru
      _
    %441 = vsyncpa [#allocation3], 1
    %442 = vsyncpa [#allocation6], 1
    %443 = vsyncpa [#allocation9], 1
    %444 = vsyncpa [#allocation4], 1

</llo_original>
